<compile_context>
chip_gen: v6e
topology: v6e:2x2x1
jax: 0.10.0
libtpu: 0.0.40
codegen_flags: <defaults>
</compile_context>

<pallas_src>
import functools
from types import SimpleNamespace

import jax
import jax.numpy as jnp
from jax import lax
from jax.experimental import pallas as pl
from jax.experimental.pallas import tpu as pltpu

_LN_EPS = 1e-5
_VMEM_LIMIT = 48 * 1024 * 1024     # headroom under v7x's 64 MiB physical VMEM
_MAX_ROW_TILE = 512                # row tile for the pipelined linear / FFN kernels


def _cparams(*dim_semantics):
    return pltpu.CompilerParams(
        dimension_semantics=tuple(dim_semantics),
        vmem_limit_bytes=_VMEM_LIMIT,
    )


def _row_tile(rows, max_tile=_MAX_ROW_TILE):
    # small arrays: a single full-extent block (always a legal block shape);
    # large arrays: 8-aligned tiles, pipelined/double-buffered by BlockSpec.
    return rows if rows <= max_tile else max_tile


# ---------------------------------------------------------------------------
# in-kernel math helpers (f32)
# ---------------------------------------------------------------------------
def _softmax_rows(s):
    m = jnp.max(s, axis=-1, keepdims=True)
    e = jnp.exp(s - m)
    return e * pl.reciprocal(jnp.sum(e, axis=-1, keepdims=True), approx=True)


def _layernorm_f32(y, g, b):
    mu = jnp.mean(y, axis=-1, keepdims=True)
    var = jnp.mean(jnp.square(y - mu), axis=-1, keepdims=True)
    return (y - mu) * lax.rsqrt(var + _LN_EPS) * g.astype(jnp.float32) + b.astype(jnp.float32)


def _sigmoid(x):
    return 1.0 / (1.0 + jnp.exp(-x))


# ---------------------------------------------------------------------------
# Row-tiled linear kernel (in_proj)
# ---------------------------------------------------------------------------
def _linear_kernel(x_ref, w_ref, b_ref, o_ref, *, activation):
    y = jnp.dot(x_ref[...], w_ref[...], preferred_element_type=jnp.float32)
    y = y + b_ref[...].astype(jnp.float32)
    if activation == "relu":
        y = jnp.maximum(y, 0.0)
    o_ref[...] = y.astype(o_ref.dtype)


def pallas_linear(x, w, b, activation=None):
    lead, din = x.shape[:-1], x.shape[-1]
    dout = w.shape[1]
    x2 = x.reshape(-1, din)
    rows = x2.shape[0]
    tr = _row_tile(rows)
    out = pl.pallas_call(
        functools.partial(_linear_kernel, activation=activation),
        grid=(pl.cdiv(rows, tr),),
        in_specs=[
            pl.BlockSpec((tr, din), lambda i: (i, 0)),
            pl.BlockSpec((din, dout), lambda i: (0, 0)),   # weight resident
            pl.BlockSpec((1, dout), lambda i: (0, 0)),
        ],
        out_specs=pl.BlockSpec((tr, dout), lambda i: (i, 0)),
        out_shape=jax.ShapeDtypeStruct((rows, dout), x.dtype),
        compiler_params=_cparams("parallel"),
    )(x2, w, b.reshape(1, dout))
    return out.reshape(lead + (dout,))


# ---------------------------------------------------------------------------
# Fused feed-forward + residual + LayerNorm2 (row-tiled)
# ---------------------------------------------------------------------------
def _ffn_kernel(x_ref, w1_ref, b1_ref, w2_ref, b2_ref, g_ref, beta_ref, o_ref):
    x = x_ref[...]
    h = jnp.dot(x, w1_ref[...], preferred_element_type=jnp.float32)
    h = jnp.maximum(h + b1_ref[...].astype(jnp.float32), 0.0)
    y = jnp.dot(h.astype(x.dtype), w2_ref[...], preferred_element_type=jnp.float32)
    y = y + b2_ref[...].astype(jnp.float32) + x.astype(jnp.float32)
    o_ref[...] = _layernorm_f32(y, g_ref[...], beta_ref[...]).astype(o_ref.dtype)


def pallas_ffn_block(x, lp):
    lead, d = x.shape[:-1], x.shape[-1]
    d2 = lp["exp_w"].shape[1]
    x2 = x.reshape(-1, d)
    rows = x2.shape[0]
    tr = _row_tile(rows)
    out = pl.pallas_call(
        _ffn_kernel,
        grid=(pl.cdiv(rows, tr),),
        in_specs=[
            pl.BlockSpec((tr, d), lambda i: (i, 0)),
            pl.BlockSpec((d, d2), lambda i: (0, 0)),
            pl.BlockSpec((1, d2), lambda i: (0, 0)),
            pl.BlockSpec((d2, d), lambda i: (0, 0)),
            pl.BlockSpec((1, d), lambda i: (0, 0)),
            pl.BlockSpec((1, d), lambda i: (0, 0)),
            pl.BlockSpec((1, d), lambda i: (0, 0)),
        ],
        out_specs=pl.BlockSpec((tr, d), lambda i: (i, 0)),
        out_shape=jax.ShapeDtypeStruct((rows, d), x.dtype),
        compiler_params=_cparams("parallel"),
    )(x2, lp["exp_w"], lp["exp_b"].reshape(1, -1), lp["sq_w"], lp["sq_b"].reshape(1, -1),
      lp["norm2_g"].reshape(1, -1), lp["norm2_b"].reshape(1, -1))
    return out.reshape(lead + (d,))


# ---------------------------------------------------------------------------
# Fused (RPE) multi-head attention + output linear + residual + LayerNorm1
# ---------------------------------------------------------------------------
def _mha_out(q, k, v, wl, num_heads, geo=None, wp=None, bp=None):
    """Multi-head attention with the head-concat + output projection fused as a
    per-head accumulated matmul:  sum_h softmax(s_h) @ v_h @ Wl[h-rows].
    q: (N, d) f32, already scaled by 1/sqrt(dh); k, v: (M, d) f32; wl: (d, d).
    If geo is given, add the relative-position term with Wp folded into q."""
    d = q.shape[-1]
    dh = d // num_heads
    y = None
    for h in range(num_heads):
        s0, s1 = h * dh, (h + 1) * dh
        q_h = q[:, s0:s1]
        k_h = k[:, s0:s1]
        v_h = v[:, s0:s1]
        s = lax.dot_general(q_h, k_h, (((1,), (1,)), ((), ())),
                            preferred_element_type=jnp.float32)          # (N, M)
        if geo is not None:
            # q_h . (geo @ Wp_h + bp_h) == (q_h @ Wp_h^T) . geo + q_h . bp_h
            wp_h = wp[:, s0:s1]                                           # (C, dh)
            qp_h = lax.dot_general(q_h.astype(wp_h.dtype), wp_h,
                                   (((1,), (1,)), ((), ())),
                                   preferred_element_type=jnp.float32)    # (N, C) on MXU
            # TODO(synk): at production N/M sizes, turn this broadcast+lane-reduce into a
            # batched MXU contraction inside a flash-style M-tiled loop (bounds VMEM too).
            rp = jnp.sum(geo * qp_h[:, None, :], axis=-1)                 # (N, M)
            s = s + rp + jnp.sum(q_h * bp[:, s0:s1], axis=-1, keepdims=True)
        p = _softmax_rows(s)
        o_h = jnp.dot(p.astype(v_h.dtype), v_h, preferred_element_type=jnp.float32)
        y_h = jnp.dot(o_h.astype(wl.dtype), wl[s0:s1, :],
                      preferred_element_type=jnp.float32)                 # (N, d)
        y = y_h if y is None else y + y_h
    return y


def _self_attn_block_kernel(x_ref, geo_ref, wq_ref, bq_ref, wkv_ref, bkv_ref,
                            wp_ref, bp_ref, wl_ref, bl_ref, g_ref, beta_ref,
                            o_ref, *, num_heads):
    x = x_ref[...]                                                        # (N, d)
    d = x.shape[-1]
    dh = d // num_heads
    scale = 1.0 / (dh ** 0.5)

    q = jnp.dot(x, wq_ref[...], preferred_element_type=jnp.float32)
    q = (q + bq_ref[...].astype(jnp.float32)) * scale                     # scale folded into q
    kv = jnp.dot(x, wkv_ref[...], preferred_element_type=jnp.float32)     # fused k|v projection
    kv = kv + bkv_ref[...].astype(jnp.float32)
    k, v = kv[:, :d], kv[:, d:]

    y = _mha_out(q, k, v, wl_ref[...], num_heads,
                 geo=geo_ref[...], wp=wp_ref[...], bp=bp_ref[...].astype(jnp.float32))
    y = y + bl_ref[...].astype(jnp.float32) + x.astype(jnp.float32)
    o_ref[...] = _layernorm_f32(y, g_ref[...], beta_ref[...]).astype(o_ref.dtype)


def _cross_attn_block_kernel(x_ref, mem_ref, wq_ref, bq_ref, wkv_ref, bkv_ref,
                             wl_ref, bl_ref, g_ref, beta_ref, o_ref, *, num_heads):
    x = x_ref[...]                                                        # (N, d)
    mem = mem_ref[...]                                                    # (M, d)
    d = x.shape[-1]
    dh = d // num_heads
    scale = 1.0 / (dh ** 0.5)

    q = jnp.dot(x, wq_ref[...], preferred_element_type=jnp.float32)
    q = (q + bq_ref[...].astype(jnp.float32)) * scale
    kv = jnp.dot(mem, wkv_ref[...], preferred_element_type=jnp.float32)
    kv = kv + bkv_ref[...].astype(jnp.float32)
    k, v = kv[:, :d], kv[:, d:]

    y = _mha_out(q, k, v, wl_ref[...], num_heads)
    y = y + bl_ref[...].astype(jnp.float32) + x.astype(jnp.float32)
    o_ref[...] = _layernorm_f32(y, g_ref[...], beta_ref[...]).astype(o_ref.dtype)


def pallas_self_attention_block(x, geo, lp, num_heads):
    B, N, d = x.shape
    M, C = geo.shape[2], geo.shape[3]
    return pl.pallas_call(
        functools.partial(_self_attn_block_kernel, num_heads=num_heads),
        grid=(B,),
        in_specs=[
            pl.BlockSpec((None, N, d), lambda b: (b, 0, 0)),
            pl.BlockSpec((None, N, M, C), lambda b: (b, 0, 0, 0)),
            pl.BlockSpec((d, d), lambda b: (0, 0)),
            pl.BlockSpec((1, d), lambda b: (0, 0)),
            pl.BlockSpec((d, 2 * d), lambda b: (0, 0)),
            pl.BlockSpec((1, 2 * d), lambda b: (0, 0)),
            pl.BlockSpec((C, d), lambda b: (0, 0)),
            pl.BlockSpec((1, d), lambda b: (0, 0)),
            pl.BlockSpec((d, d), lambda b: (0, 0)),
            pl.BlockSpec((1, d), lambda b: (0, 0)),
            pl.BlockSpec((1, d), lambda b: (0, 0)),
            pl.BlockSpec((1, d), lambda b: (0, 0)),
        ],
        out_specs=pl.BlockSpec((None, N, d), lambda b: (b, 0, 0)),
        out_shape=jax.ShapeDtypeStruct((B, N, d), x.dtype),
        compiler_params=_cparams("parallel"),
    )(x, geo,
      lp["q_w"], lp["q_b"].reshape(1, -1),
      lp["kv_w"], lp["kv_b"].reshape(1, -1),
      lp["p_w"], lp["p_b"].reshape(1, -1),
      lp["lin_w"], lp["lin_b"].reshape(1, -1),
      lp["norm1_g"].reshape(1, -1), lp["norm1_b"].reshape(1, -1))


def pallas_cross_attention_block(x, mem, lp, num_heads):
    B, N, d = x.shape
    M = mem.shape[1]
    return pl.pallas_call(
        functools.partial(_cross_attn_block_kernel, num_heads=num_heads),
        grid=(B,),
        in_specs=[
            pl.BlockSpec((None, N, d), lambda b: (b, 0, 0)),
            pl.BlockSpec((None, M, d), lambda b: (b, 0, 0)),
            pl.BlockSpec((d, d), lambda b: (0, 0)),
            pl.BlockSpec((1, d), lambda b: (0, 0)),
            pl.BlockSpec((d, 2 * d), lambda b: (0, 0)),
            pl.BlockSpec((1, 2 * d), lambda b: (0, 0)),
            pl.BlockSpec((d, d), lambda b: (0, 0)),
            pl.BlockSpec((1, d), lambda b: (0, 0)),
            pl.BlockSpec((1, d), lambda b: (0, 0)),
            pl.BlockSpec((1, d), lambda b: (0, 0)),
        ],
        out_specs=pl.BlockSpec((None, N, d), lambda b: (b, 0, 0)),
        out_shape=jax.ShapeDtypeStruct((B, N, d), x.dtype),
        compiler_params=_cparams("parallel"),
    )(x, mem,
      lp["q_w"], lp["q_b"].reshape(1, -1),
      lp["kv_w"], lp["kv_b"].reshape(1, -1),
      lp["lin_w"], lp["lin_b"].reshape(1, -1),
      lp["norm1_g"].reshape(1, -1), lp["norm1_b"].reshape(1, -1))


# ---------------------------------------------------------------------------
# Fused matching head: out_proj + cosine similarity + score head + saliency + sigmoid
# ---------------------------------------------------------------------------
def _matching_head_kernel(f1_ref, f2_ref, wo_ref, bo_ref, ws_ref, bs_ref,
                          atten_ref, score_ref, sal_ref, *, inv_temp, normalize):
    f1 = f1_ref[...]                                                      # (n1+1, d)
    f2 = f2_ref[...]                                                      # (n2+1, d)

    bo = bo_ref[...].astype(jnp.float32)
    f1p = jnp.dot(f1, wo_ref[...], preferred_element_type=jnp.float32) + bo
    f2p = jnp.dot(f2, wo_ref[...], preferred_element_type=jnp.float32) + bo
    if normalize:
        f1p = f1p / jnp.maximum(jnp.sqrt(jnp.sum(f1p * f1p, axis=-1, keepdims=True)), 1e-12)
        f2p = f2p / jnp.maximum(jnp.sqrt(jnp.sum(f2p * f2p, axis=-1, keepdims=True)), 1e-12)
    atten = lax.dot_general(f1p, f2p, (((1,), (1,)), ((), ())),
                            preferred_element_type=jnp.float32) * inv_temp  # (n1+1, n2+1)
    atten_ref[...] = atten.astype(atten_ref.dtype)

    # score head (lane-dense row output, MXU contraction): s[0, i] = w . f[i] + b
    ws = ws_ref[...]                                                      # (1, d)
    bs = bs_ref[...].astype(jnp.float32)                                  # (1, 1)
    s1 = lax.dot_general(ws, f1[1:, :], (((1,), (1,)), ((), ())),
                         preferred_element_type=jnp.float32) + bs         # (1, n1)
    s2 = lax.dot_general(ws, f2[1:, :], (((1,), (1,)), ((), ())),
                         preferred_element_type=jnp.float32) + bs         # (1, n2)

    a = atten[1:, 1:]                                                     # (n1, n2) f32
    # m1[i] = sum_j softmax_row(a)[i, j] * s2[j]   (computed lane-dense, no transpose)
    p12 = _softmax_rows(a)
    m1 = lax.dot_general(s2, p12, (((1,), (1,)), ((), ())),
                         preferred_element_type=jnp.float32)              # (1, n1)
    # m2[j] = sum_i softmax_col(a)[i, j] * s1[i]   (column softmax, no transpose)
    mx = jnp.max(a, axis=0, keepdims=True)
    e = jnp.exp(a - mx)
    p21 = e * pl.reciprocal(jnp.sum(e, axis=0, keepdims=True), approx=True)
    m2 = jnp.dot(s1, p21, preferred_element_type=jnp.float32)             # (1, n2)

    score_ref[...] = _sigmoid(jnp.concatenate([s1, s2], axis=-1)).astype(score_ref.dtype)
    sal_ref[...] = _sigmoid(jnp.concatenate([m1, m2], axis=-1)).astype(sal_ref.dtype)


def pallas_matching_head(f1, f2, w_out, b_out, w_score, b_score, temp, normalize):
    B, N1, d = f1.shape
    N2 = f2.shape[1]
    dout = w_out.shape[1]
    n1, n2 = N1 - 1, N2 - 1
    kernel = functools.partial(_matching_head_kernel,
                               inv_temp=1.0 / float(temp), normalize=bool(normalize))
    atten, score, sal = pl.pallas_call(
        kernel,
        grid=(B,),
        in_specs=[
            pl.BlockSpec((None, N1, d), lambda b: (b, 0, 0)),
            pl.BlockSpec((None, N2, d), lambda b: (b, 0, 0)),
            pl.BlockSpec((d, dout), lambda b: (0, 0)),
            pl.BlockSpec((1, dout), lambda b: (0, 0)),
            pl.BlockSpec((1, d), lambda b: (0, 0)),
            pl.BlockSpec((1, 1), lambda b: (0, 0)),
        ],
        out_specs=(
            pl.BlockSpec((None, N1, N2), lambda b: (b, 0, 0)),
            pl.BlockSpec((None, 1, n1 + n2), lambda b: (b, 0, 0)),
            pl.BlockSpec((None, 1, n1 + n2), lambda b: (b, 0, 0)),
        ),
        out_shape=(
            jax.ShapeDtypeStruct((B, N1, N2), jnp.float32),      # keep similarity in f32
            jax.ShapeDtypeStruct((B, 1, n1 + n2), jnp.float32),
            jax.ShapeDtypeStruct((B, 1, n1 + n2), jnp.float32),
        ),
        compiler_params=_cparams("parallel"),
    )(f1, f2, w_out, b_out.reshape(1, -1), w_score.reshape(1, -1), b_score.reshape(1, 1))
    return atten, score.reshape(B, n1 + n2), sal.reshape(B, n1 + n2)


# ---------------------------------------------------------------------------
# GeoTransformer-style layers (self RPE attention + cross attention), shared weights
# ---------------------------------------------------------------------------
def rpe_transformer_layer_self(lp, x, geo, num_heads):
    x1 = pallas_self_attention_block(x, geo, lp, num_heads)
    return pallas_ffn_block(x1, lp)


def transformer_layer_cross(lp, x, mem, num_heads):
    x1 = pallas_cross_attention_block(x, mem, lp, num_heads)
    return pallas_ffn_block(x1, lp)


def geometric_transformer_block(bp, f1, geo1, f2, geo2, num_heads):
    f1 = rpe_transformer_layer_self(bp["self"], f1, geo1, num_heads)
    f2 = rpe_transformer_layer_self(bp["self"], f2, geo2, num_heads)
    f1 = transformer_layer_cross(bp["cross"], f1, f2, num_heads)
    f2 = transformer_layer_cross(bp["cross"], f2, f1, num_heads)
    return f1, f2


# ---------------------------------------------------------------------------
# Parameter init (deterministic, synthetic)
# ---------------------------------------------------------------------------
def _lin(key, din, dout, scale=0.02):
    w = jax.random.normal(key, (din, dout), jnp.float32) * scale
    b = jnp.zeros((dout,), jnp.float32)
    return w, b


def init_params(key, cfg):
    d = cfg.hidden_dim
    keys = iter(jax.random.split(key, 256))
    params = {}
    params["in_proj_w"], params["in_proj_b"] = _lin(next(keys), cfg.input_dim, d)
    params["out_proj_w"], params["out_proj_b"] = _lin(next(keys), d, cfg.out_dim)
    params["bg_token"] = jax.random.normal(next(keys), (1, 1, d), jnp.float32) * 0.02

    def attn_layer(with_p):
        lp = {}
        lp["q_w"], lp["q_b"] = _lin(next(keys), d, d)
        kw, kb = _lin(next(keys), d, d)
        vw, vb = _lin(next(keys), d, d)
        lp["kv_w"] = jnp.concatenate([kw, vw], axis=1)      # fused k|v projection weight
        lp["kv_b"] = jnp.concatenate([kb, vb], axis=0)
        if with_p:
            lp["p_w"], lp["p_b"] = _lin(next(keys), d, d)
        lp["lin_w"], lp["lin_b"] = _lin(next(keys), d, d)
        lp["norm1_g"] = jnp.ones((d,), jnp.float32)
        lp["norm1_b"] = jnp.zeros((d,), jnp.float32)
        lp["exp_w"], lp["exp_b"] = _lin(next(keys), d, 2 * d)
        lp["sq_w"], lp["sq_b"] = _lin(next(keys), 2 * d, d)
        lp["norm2_g"] = jnp.ones((d,), jnp.float32)
        lp["norm2_b"] = jnp.zeros((d,), jnp.float32)
        return lp

    params["blocks"] = []
    params["score_heads"] = []
    for _ in range(cfg.nblock):
        params["blocks"].append({"self": attn_layer(True), "cross": attn_layer(False)})
        sw, sb = _lin(next(keys), d, 1)
        params["score_heads"].append({"w": sw, "b": sb})
    return params


# ---------------------------------------------------------------------------
# Module forward (eval mode)
# ---------------------------------------------------------------------------
def coarse_point_matching_forward(params, cfg, p1, f1, geo1, p2, f2, geo2, radius, end_points):
    B, n1 = f1.shape[0], f1.shape[1]
    n2 = f2.shape[1]
    d = cfg.hidden_dim

    f1 = pallas_linear(f1, params["in_proj_w"], params["in_proj_b"])
    f2 = pallas_linear(f2, params["in_proj_w"], params["in_proj_b"])
    bg = jnp.broadcast_to(params["bg_token"].astype(f1.dtype), (B, 1, d))
    f1 = jnp.concatenate([bg, f1], axis=1)   # (B, n1+1, d)
    f2 = jnp.concatenate([bg, f2], axis=1)   # (B, n2+1, d)

    assert cfg.sim_type == "cosine"
    atten = score = saliency = None
    for idx in range(cfg.nblock):
        f1, f2 = geometric_transformer_block(params["blocks"][idx], f1, geo1, f2, geo2,
                                             cfg.num_heads)
        if idx == cfg.nblock - 1:  # eval mode: only the last block produces outputs
            sh = params["score_heads"][idx]
            atten, score, saliency = pallas_matching_head(
                f1, f2, params["out_proj_w"], params["out_proj_b"],
                sh["w"], sh["b"], cfg.temp, cfg.normalize_feat)

    # TODO(synk): compute_coarse_Rt_overlap (proposal sampling + weighted-SVD pose solver)
    # and the training-only branches (aug_pose_noise, compute_overlap_loss, compute_soft_loss)
    # are not defined in the reference snippet; returning identity pose placeholders.
    end_points["init_R"] = jnp.broadcast_to(jnp.eye(3, dtype=jnp.float32), (B, 3, 3))
    end_points["init_t"] = jnp.zeros((B, 3), jnp.float32)
    end_points["init_pose_score"] = jnp.zeros((B,), jnp.float32)
    end_points["coarse_atten"] = atten
    end_points["coarse_score"] = score
    end_points["coarse_saliency"] = saliency
    return end_points


# ---------------------------------------------------------------------------
# Demo
# ---------------------------------------------------------------------------
if __name__ == "__main__":
    cfg = SimpleNamespace(
        input_dim=16, hidden_dim=32, out_dim=32, nblock=2, num_heads=4,
        sim_type="cosine", temp=0.1, normalize_feat=True,
        nproposal1=6, nproposal2=3,
    )

    key = jax.random.PRNGKey(0)
    kp, kf1, kg1, kp2, kf2, kg2, kr, kw = jax.random.split(key, 8)

    B, n1, n2 = 2, 8, 8
    p1 = jax.random.normal(kp, (B, n1, 3), jnp.float32)
    f1 = jax.random.normal(kf1, (B, n1, cfg.input_dim), jnp.float32)
    geo1 = jax.random.normal(kg1, (B, n1 + 1, n1 + 1, cfg.hidden_dim), jnp.float32) * 0.1
    p2 = jax.random.normal(kp2, (B, n2, 3), jnp.float32)
    f2 = jax.random.normal(kf2, (B, n2, cfg.input_dim), jnp.float32)
    geo2 = jax.random.normal(kg2, (B, n2 + 1, n2 + 1, cfg.hidden_dim), jnp.float32) * 0.1
    radius = jnp.abs(jax.random.normal(kr, (B,), jnp.float32)) + 1.0

    params = init_params(kw, cfg)

    end_points = coarse_point_matching_forward(
        params, cfg, p1, f1, geo1, p2, f2, geo2, radius, {})
    end_points = jax.block_until_ready(end_points)

    assert end_points["coarse_atten"].shape == (B, n1 + 1, n2 + 1)
    assert end_points["coarse_score"].shape == (B, n1 + n2)
    assert end_points["coarse_saliency"].shape == (B, n1 + n2)
    assert end_points["init_R"].shape == (B, 3, 3)
    assert bool(jnp.all(jnp.isfinite(end_points["coarse_atten"])))
    print("KERNEL_OK")
</pallas_src>

<mosaic_0001>
module attributes {stable_mosaic.version = 11 : i64} {
  func.func @_linear_kernel(%arg0: i32, %arg1: memref<16x16xf32, #tpu.memory_space<vmem>>, %arg2: memref<16x32xf32, #tpu.memory_space<vmem>>, %arg3: memref<1x32xf32, #tpu.memory_space<vmem>>, %arg4: memref<16x32xf32, #tpu.memory_space<vmem>>) attributes {dimension_semantics = [#tpu.dimension_semantics<parallel>], iteration_bounds = array<i64: 1>, scalar_prefetch = 0 : i64, scratch_operands = 0 : i64, tpu.core_type = #tpu.core_type<tc>, window_params = [{transform_indices = @transform_0, window_bounds = array<i64: 16, 16>}, {pipeline_mode = #tpu.pipeline_mode<synchronous>, transform_indices = @transform_1, window_bounds = array<i64: 16, 32>}, {pipeline_mode = #tpu.pipeline_mode<synchronous>, transform_indices = @transform_2, window_bounds = array<i64: 1, 32>}, {transform_indices = @transform_3, window_bounds = array<i64: 16, 32>}]} {
    %c0 = arith.constant 0 : index
    %c0_0 = arith.constant 0 : index
    %0 = vector.load %arg1[%c0, %c0_0] : memref<16x16xf32, #tpu.memory_space<vmem>>, vector<16x16xf32>
    %c0_1 = arith.constant 0 : index
    %c0_2 = arith.constant 0 : index
    %1 = vector.load %arg2[%c0_1, %c0_2] : memref<16x32xf32, #tpu.memory_space<vmem>>, vector<16x32xf32>
    %cst = arith.constant dense<0.000000e+00> : vector<16x32xf32>
    %2 = tpu.matmul %0, %1, %cst {dimension_numbers = #tpu.dot_dimension_numbers<[1], [0], [0], [1], [0, 0, 1, 1], [], []>} : vector<16x16xf32>, vector<16x32xf32>, vector<16x32xf32> -> vector<16x32xf32>
    %c0_3 = arith.constant 0 : index
    %c0_4 = arith.constant 0 : index
    %3 = vector.load %arg3[%c0_3, %c0_4] : memref<1x32xf32, #tpu.memory_space<vmem>>, vector<1x32xf32>
    %4 = vector.broadcast %3 : vector<1x32xf32> to vector<16x32xf32>
    %5 = arith.addf %2, %4 : vector<16x32xf32>
    %c0_5 = arith.constant 0 : index
    %c0_6 = arith.constant 0 : index
    %6 = vector.load %arg4[%c0_5, %c0_6] : memref<16x32xf32, #tpu.memory_space<vmem>>, vector<16x32xf32>
    tpu.vector_store %arg4[%c0_5, %c0_6], %5 {strides = array<i32>} : memref<16x32xf32, #tpu.memory_space<vmem>>, vector<16x32xf32>,
    return
  }
  func.func @transform_0(%arg0: i32) -> (i32, i32) {
    %c0_i32 = arith.constant 0 : i32
    %c0_i32_0 = arith.constant 0 : i32
    return %arg0, %c0_i32 : i32, i32
  }
  func.func @transform_1(%arg0: i32) -> (i32, i32) {
    %c0_i32 = arith.constant 0 : i32
    %c0_i32_0 = arith.constant 0 : i32
    %c0_i32_1 = arith.constant 0 : i32
    return %c0_i32, %c0_i32_0 : i32, i32
  }
  func.func @transform_2(%arg0: i32) -> (i32, i32) {
    %c0_i32 = arith.constant 0 : i32
    %c0_i32_0 = arith.constant 0 : i32
    %c0_i32_1 = arith.constant 0 : i32
    return %c0_i32, %c0_i32_0 : i32, i32
  }
  func.func @transform_3(%arg0: i32) -> (i32, i32) {
    %c0_i32 = arith.constant 0 : i32
    %c0_i32_0 = arith.constant 0 : i32
    return %arg0, %c0_i32 : i32, i32
  }
}

</mosaic_0001>

<llo_original>
// kernel: tpu_custom_call.1
$region0: #{tpu_custom_call.1}
  #allocation0 [shape = 'u32[]', space=smem, size = 0x4, offset = 0x4, fixed_abs, tag = 'smem constant byte address 0x4 - core index']
  #allocation1 [shape = 'u32[144,128]{1,0:T(1,128)}', space=vmem, size = 0x12000, scoped, tag = 'internal scratch']
  %s0 = inlined_call_operand.hbm [shape: f32[16,16], index: 0, kind: input, shape index: {}]
  %s1 = inlined_call_operand.hbm [shape: f32[16,32], index: 1, kind: input, shape index: {}]
  %s2 = inlined_call_operand.vmem [shape: f32[1,32], index: 2, kind: input, shape index: {}]
  %s3 = inlined_call_operand.hbm [shape: f32[16,32], index: 3, kind: output, shape index: {}]
  %s4 = sld [smem:[#allocation0]]
  $region30: #{tpu_custom_call.1} parent=0
    _
  %s6 = ssub.s32 1, %s4
  %s7 = scalar_select 0, %s6, %s4
  $region1: #{tpu_custom_call.1} parent=0
    #allocation2 [shape = 'u8[8192]{0}', space=vmem, size = 0x2000, scoped, tag = 'input window, operand 0, single buffered']
    #allocation3 [shape = 's32[1]{0}', space=sflag, size = 0x4, scoped, tag = 'scoped memory for tpu_custom_call.1']
    #allocation4 [shape = 's32[1]{0}', space=sflag, size = 0x4, scoped, tag = 'scoped memory for tpu_custom_call.1']
    #allocation5 [shape = 'u8[8192]{0}', space=vmem, size = 0x2000, scoped, tag = 'input window, operand 1, single buffered']
    #allocation6 [shape = 's32[1]{0}', space=sflag, size = 0x4, scoped, tag = 'scoped memory for tpu_custom_call.1']
    #allocation7 [shape = 'u8[8192]{0}', space=vmem, size = 0x2000, scoped, tag = 'output window, operand 0, single buffered']
    %8 = vsyncpa [#allocation3], 0
    %9 = vsyncpa [#allocation6], 0
    %10 = vsyncpa [#allocation4], 0
    // Predicated region
    $region2: #{tpu_custom_call.1} parent=1 // pred_check
      _
    $region3: #{tpu_custom_call.1} parent=1 // pred_check_branch
      %12 = sbr.rel (0) target = $region5
    $region4: #{tpu_custom_call.1} parent=1 // pred_region
      %s14 = ssub.s32 256, 256
      %15 = vsyncadd [#allocation3], %s14
      %s16 = sshll.u32 [#allocation2], 4
      %s17 = int_to_ptr.vmem [resolvable:$true] %s16
      %22 = dma.hbm_to_vmem [thread:$0]  %s0, 256, %s17, [#allocation3], 128, 128, 8
    $region5: #{tpu_custom_call.1} parent=1 // pred_fallthru
      _
    // Predicated region
    $region6: #{tpu_custom_call.1} parent=1 // pred_check
      _
    $region7: #{tpu_custom_call.1} parent=1 // pred_check_branch
      %24 = sbr.rel (0) target = $region9
    $region8: #{tpu_custom_call.1} parent=1 // pred_region
      %s26 = ssub.s32 256, 256
      %27 = vsyncadd [#allocation6], %s26
      %s28 = sshll.u32 [#allocation5], 4
      %s29 = int_to_ptr.vmem [resolvable:$true] %s28
      %34 = dma.hbm_to_vmem [thread:$0]  %s1, 256, %s29, [#allocation6], 128, 128, 8
    $region9: #{tpu_custom_call.1} parent=1 // pred_fallthru
      _
    // Predicated region
    $region10: #{tpu_custom_call.1} parent=1 // pred_check
      _
    $region11: #{tpu_custom_call.1} parent=1 // pred_check_branch
      %36 = sbr.rel (0) target = $region13
    $region12: #{tpu_custom_call.1} parent=1 // pred_region
      _
    $region13: #{tpu_custom_call.1} parent=1 // pred_fallthru
      _
    // Predicated region
    $region14: #{tpu_custom_call.1} parent=1 // pred_check
      _
    $region15: #{tpu_custom_call.1} parent=1 // pred_check_branch
      %38 = sbr.rel (0) target = $region17
    $region16: #{tpu_custom_call.1} parent=1 // pred_region
      %39 = dma.done [#allocation3], 256
    $region17: #{tpu_custom_call.1} parent=1 // pred_fallthru
      _
    // Predicated region
    $region18: #{tpu_custom_call.1} parent=1 // pred_check
      _
    $region19: #{tpu_custom_call.1} parent=1 // pred_check_branch
      %41 = sbr.rel (0) target = $region21
    $region20: #{tpu_custom_call.1} parent=1 // pred_region
      %42 = dma.done [#allocation6], 256
    $region21: #{tpu_custom_call.1} parent=1 // pred_fallthru
      _
    %v43 = vld [vmem:[#allocation2] sm:$0xff]
    %v44 = vld [vmem:[#allocation2 + $0x8] sm:$0xff]
    %v45 = vld [vmem:[#allocation5] sm:$0xff]
    %v46 = vld [vmem:[#allocation5 + $0x8] sm:$0xff]
    %v47 = vld [vmem:[%s2] sm:$0x1]
    %v49 = vlaneseq
    %v50 = vshrl.u32 %v49, 7
    %v51 = vsub.s32 0, %v50
    %v52 = vrot.slane %v47, %v51
    %vm54 = vcmask 130048
    %v56 = vsel %vm54, %v43, 0
    %v59 = vsel %vm54, %v44, 0
    %61 = vmatprep.subr.mxu0 0.0
    %62 = vmatpush1.msra.mxu0 0.0
    %63 = vmatprep.subr.mxu0 0.0
    %64 = vmatpush1.msra.mxu0 0.0
    %65 = vmatprep.subr.mxu0 0.0
    %66 = vmatpush1.msra.mxu0 0.0
    %67 = vmatprep.subr.mxu0 0.0
    %68 = vmatpush1.msra.mxu0 0.0
    %69 = vmatprep.subr.mxu0 0.0
    %70 = vmatpush1.msra.mxu0 0.0
    %71 = vmatprep.subr.mxu0 0.0
    %72 = vmatpush1.msra.mxu0 0.0
    %73 = vmatprep.subr.mxu0 0.0
    %74 = vmatpush1.msra.mxu0 0.0
    %75 = vmatprep.subr.mxu0 0.0
    %76 = vmatpush1.msra.mxu0 0.0
    %77 = vmatprep.subr.mxu0 0.0
    %78 = vmatpush1.msra.mxu0 0.0
    %79 = vmatprep.subr.mxu0 0.0
    %80 = vmatpush1.msra.mxu0 0.0
    %81 = vmatprep.subr.mxu0 0.0
    %82 = vmatpush1.msra.mxu0 0.0
    %83 = vmatprep.subr.mxu0 0.0
    %84 = vmatpush1.msra.mxu0 0.0
    %85 = vmatprep.subr.mxu0 0.0
    %86 = vmatpush1.msra.mxu0 0.0
    %87 = vmatprep.subr.mxu0 0.0
    %88 = vmatpush1.msra.mxu0 0.0
    %89 = vmatprep.subr.mxu0 0.0
    %90 = vmatpush1.msra.mxu0 %v46
    %91 = vmatprep.subr.mxu0 0.0
    %92 = vmatpush1.msra.mxu0 %v45
    %93 = vmatprep.subr.mxu0 0.0
    %94 = vmatpush2.msra.mxu0 0.0
    %95 = vmatprep.subr.mxu0 0.0
    %96 = vmatpush2.msra.mxu0 0.0
    %97 = vmatprep.subr.mxu0 0.0
    %98 = vmatpush2.msra.mxu0 0.0
    %99 = vmatprep.subr.mxu0 0.0
    %100 = vmatpush2.msra.mxu0 0.0
    %101 = vmatprep.subr.mxu0 0.0
    %102 = vmatpush2.msra.mxu0 0.0
    %103 = vmatprep.subr.mxu0 0.0
    %104 = vmatpush2.msra.mxu0 0.0
    %105 = vmatprep.subr.mxu0 0.0
    %106 = vmatpush2.msra.mxu0 0.0
    %107 = vmatprep.subr.mxu0 0.0
    %108 = vmatpush2.msra.mxu0 0.0
    %109 = vmatprep.subr.mxu0 0.0
    %110 = vmatpush2.msra.mxu0 0.0
    %111 = vmatprep.subr.mxu0 0.0
    %112 = vmatpush2.msra.mxu0 0.0
    %113 = vmatprep.subr.mxu0 0.0
    %114 = vmatpush2.msra.mxu0 0.0
    %115 = vmatprep.subr.mxu0 0.0
    %116 = vmatpush2.msra.mxu0 0.0
    %117 = vmatprep.subr.mxu0 0.0
    %118 = vmatpush2.msra.mxu0 0.0
    %119 = vmatprep.subr.mxu0 0.0
    %120 = vmatpush2.msra.mxu0 0.0
    %121 = vmatprep.subr.mxu0 0.0
    %122 = vmatpush2.msra.mxu0 0.0
    %123 = vmatprep.subr.mxu0 0.0
    %124 = vmatpush2.msra.mxu0 0.0
    %125 = vmatprep.mubr.f32.mxu0 0.0
    %126 = vmatmul.mubr.f32.gmra.mxu0 %v56
    %v127 = vpop.f32.mrf.mxu0
    %v128 = vadd.f32 %v52, %v127
    %v129 = vpop.f32.mrf.mxu0
    %130 = vmatprep.mubr.f32.mxu0 0.0
    %131 = vmatmul.mubr.f32.gmra.mxu0 %v59
    %v132 = vpop.f32.mrf.mxu0
    %v133 = vadd.f32 %v52, %v132
    %v134 = vpop.f32.mrf.mxu0
    %135 = vdwg.mxu0
    %vm136 = vcmask 261120
    %137 = vst.msk [vmem:[#allocation7] sm:$0xff] %vm136, %v128
    %138 = vst.msk [vmem:[#allocation7 + $0x8] sm:$0xff] %vm136, %v133
    // Predicated region
    $region22: #{tpu_custom_call.1} parent=1 // pred_check
      _
    $region23: #{tpu_custom_call.1} parent=1 // pred_check_branch
      %140 = sbr.rel (0) target = $region25
    $region24: #{tpu_custom_call.1} parent=1 // pred_region
      %s142 = ssub.s32 256, 256
      %143 = vsyncadd [#allocation4], %s142
      %s144 = sshll.u32 [#allocation7], 4
      %s145 = int_to_ptr.vmem [resolvable:$true] %s144
      %150 = dma.vmem_to_hbm [thread:$0]  %s145, 256, %s3, [#allocation4], 128, 128, 8
    $region25: #{tpu_custom_call.1} parent=1 // pred_fallthru
      _
    // Predicated region
    $region26: #{tpu_custom_call.1} parent=1 // pred_check
      _
    $region27: #{tpu_custom_call.1} parent=1 // pred_check_branch
      %152 = sbr.rel (0) target = $region29
    $region28: #{tpu_custom_call.1} parent=1 // pred_region
      %153 = dma.done [#allocation4], 256
    $region29: #{tpu_custom_call.1} parent=1 // pred_fallthru
      _
    %154 = vsyncpa [#allocation3], 1
    %155 = vsyncpa [#allocation6], 1
    %156 = vsyncpa [#allocation4], 1

</llo_original>
